<compile_context>
chip_gen: v7x
topology: tpu7x:2x2x1
jax: 0.10.0
libtpu: 0.0.40
codegen_flags: <defaults>
</compile_context>

<pallas_src>
import functools
from types import SimpleNamespace

import jax
import jax.numpy as jnp
from jax.experimental import pallas as pl
from jax.experimental.pallas import tpu as pltpu


def _round_up(x, m):
    return (x + m - 1) // m * m


def _cls_loss_kernel(*refs, loss_mode, loss_power, kl_lambda,
                     use_kl, use_weight, batch, block_b):
    """Per-tile body: folds this tile's masked loss sum into the (1,1) accumulator."""
    idx = 0
    predy_ref = refs[idx]; idx += 1
    target_ref = refs[idx]; idx += 1
    weight_ref = None
    if use_weight:
        weight_ref = refs[idx]; idx += 1
    mu_ref = logvar_ref = None
    if use_kl:
        mu_ref = refs[idx]; logvar_ref = refs[idx + 1]; idx += 2
    out_ref = refs[idx]

    # (1,1) output block is resident across the whole grid (reduction axis).
    @pl.when(pl.program_id(0) == 0)
    def _init():
        out_ref[...] = jnp.zeros_like(out_ref)

    logits = predy_ref[...].astype(jnp.float32)               # (TB, C)
    tb, c = logits.shape

    # Per-sample cross-entropy: logp_i = logsumexp(logits_i) - logits_i[target_i]
    m = jnp.max(logits, axis=-1, keepdims=True)                # (TB, 1)
    lse = jnp.log(jnp.sum(jnp.exp(logits - m), axis=-1, keepdims=True)) + m
    cls_ids = jax.lax.broadcasted_iota(jnp.int32, (tb, c), 1)
    tgt_logit = jnp.sum(jnp.where(cls_ids == target_ref[...], logits, 0.0),
                        axis=-1, keepdims=True)                # (TB, 1)
    logp = lse - tgt_logit                                     # per-sample CE

    if loss_mode == 'focal_loss':
        prob = jnp.exp(-logp)
        base = jnp.maximum(1.0 - prob, 0.0)   # clamp fp-rounding negatives -> no NaN
        p_int = int(loss_power)
        if float(p_int) == float(loss_power) and 0 <= p_int <= 4:
            mod = jnp.ones_like(base)
            for _ in range(p_int):            # VPU multiplies instead of EUP pow
                mod = mod * base
        else:
            mod = base ** jnp.float32(loss_power)
        per_sample = mod * logp
    else:
        per_sample = logp
        if use_weight:
            per_sample = per_sample * weight_ref[...].astype(jnp.float32)

    if use_kl:
        mu = mu_ref[...].astype(jnp.float32)                   # (TB, D)
        lv = logvar_ref[...].astype(jnp.float32)
        kl = (mu * mu + jnp.exp(lv) - lv - 1.0) * 0.5           # == -(1+lv-mu^2-e^lv)/2
        per_sample = per_sample + jnp.float32(kl_lambda) * jnp.sum(
            kl, axis=-1, keepdims=True)

    # Mask rows past the true batch (ragged last block reads are undefined) and
    # fold this tile's contribution into the resident scalar accumulator.
    row_ids = (pl.program_id(0) * block_b
               + jax.lax.broadcasted_iota(jnp.int32, (tb, 1), 0))
    masked = jnp.where(row_ids < batch, per_sample, 0.0)
    out_ref[...] += jnp.sum(masked, axis=0, keepdims=True)      # (1, 1)

    @pl.when(pl.program_id(0) == pl.num_programs(0) - 1)
    def _finalize():
        out_ref[...] = out_ref[...] * jnp.float32(1.0 / batch)


def cls_loss(args, predy, target, weight=None, mu=None, logvar=None, block_b=None):
    """Pallas implementation of ClsLoss.forward. Returns a scalar float32."""
    if args.loss_mode == 'hardmining':
        # TODO(synk): reference PyTorch hardmining branch is broken (uses undefined
        # `label` / `batch_size` / `ind_sorted` / `pred`); refuse instead of
        # silently computing a different loss.
        raise NotImplementedError("ClsLoss 'hardmining' branch is not supported")

    B, C = predy.shape
    use_weight = (weight is not None) and (args.loss_mode != 'focal_loss')
    use_kl = (mu is not None) and (logvar is not None)
    D = mu.shape[1] if use_kl else 0

    if block_b is not None:
        tb = int(block_b)                 # test/override hook
    else:
        # Sublane packing of the narrowest per-row operand dtype.
        itemsizes = [jnp.dtype(predy.dtype).itemsize]
        if use_kl:
            itemsizes += [jnp.dtype(mu.dtype).itemsize,
                          jnp.dtype(logvar.dtype).itemsize]
        row_align = {4: 8, 2: 16, 1: 32}.get(min(itemsizes), 8)

        # Bytes per batch row with default double-buffering; size TB so the tiles
        # fit the most conservative scoped-VMEM default (16 MiB on v5e; 32 MiB on
        # v6e/v7x) with headroom -- no need to raise vmem_limit_bytes.
        row_bytes = 2 * (C * jnp.dtype(predy.dtype).itemsize + 4)   # logits + target
        if use_weight:
            row_bytes += 2 * jnp.dtype(weight.dtype).itemsize
        if use_kl:
            row_bytes += 2 * D * (jnp.dtype(mu.dtype).itemsize
                                  + jnp.dtype(logvar.dtype).itemsize)
        vmem_budget = 12 * 1024 * 1024
        tb = max(row_align, min(2048, vmem_budget // row_bytes))
        tb = (tb // row_align) * row_align
        if B <= tb:
            tb = B                        # single exact block, no ragged reads

    num_tiles = pl.cdiv(B, tb)

    # Conditional operand list: no dummy DMAs for unused weight / mu / logvar.
    operands = [predy, target.reshape(B, 1).astype(jnp.int32)]
    specs = [pl.BlockSpec((tb, C), lambda i: (i, 0)),
             pl.BlockSpec((tb, 1), lambda i: (i, 0))]
    if use_weight:
        operands.append(weight.reshape(B, 1))
        specs.append(pl.BlockSpec((tb, 1), lambda i: (i, 0)))
    if use_kl:
        operands.append(mu)
        operands.append(logvar)
        specs.append(pl.BlockSpec((tb, D), lambda i: (i, 0)))
        specs.append(pl.BlockSpec((tb, D), lambda i: (i, 0)))

    # Advisory cost hint (true, unpadded sizes) for XLA scheduling.
    bytes_accessed = sum(int(x.size) * x.dtype.itemsize for x in operands) + 4
    flops = 6 * B * C
    transcendentals = B * C
    if args.loss_mode == 'focal_loss':
        flops += 4 * B
        transcendentals += B
    if use_kl:
        flops += 8 * B * D
        transcendentals += B * D

    kernel = functools.partial(
        _cls_loss_kernel,
        loss_mode=args.loss_mode,
        loss_power=float(args.loss_power),
        kl_lambda=float(args.kl_lambda),
        use_kl=use_kl,
        use_weight=use_weight,
        batch=B,
        block_b=tb,
    )

    loss = pl.pallas_call(
        kernel,
        out_shape=jax.ShapeDtypeStruct((1, 1), jnp.float32),
        grid_spec=pltpu.PrefetchScalarGridSpec(
            num_scalar_prefetch=0,
            grid=(num_tiles,),
            in_specs=specs,
            out_specs=pl.BlockSpec((1, 1), lambda i: (0, 0)),
        ),
        compiler_params=pltpu.CompilerParams(
            # Grid axis is a reduction into the resident (1,1) output block.
            dimension_semantics=("arbitrary",)),
        cost_estimate=pl.CostEstimate(
            flops=flops,
            transcendentals=transcendentals,
            bytes_accessed=bytes_accessed),
    )(*operands)

    return loss[0, 0]


def _reference(args, predy, target, weight=None, mu=None, logvar=None):
    """Pure-JAX reference mirroring the PyTorch semantics."""
    logits = predy.astype(jnp.float32)
    lse = jax.scipy.special.logsumexp(logits, axis=-1)
    logp = lse - jnp.take_along_axis(logits, target[:, None], axis=-1)[:, 0]
    if args.loss_mode == 'focal_loss':
        prob = jnp.exp(-logp)
        loss = jnp.mean((1.0 - prob) ** args.loss_power * logp)
    else:
        if weight is not None:
            logp = logp * weight
        loss = jnp.mean(logp)
    if mu is not None and logvar is not None:
        kl = -(1.0 + logvar - mu ** 2 - jnp.exp(logvar)) / 2.0
        loss = loss + args.kl_lambda * jnp.mean(jnp.sum(kl, axis=1))
    return loss


if __name__ == "__main__":
    key = jax.random.PRNGKey(0)
    B, C, D = 8, 32, 16   # batch, num classes, latent dim

    k1, k2, k3, k4, k5 = jax.random.split(key, 5)
    predy = jax.random.normal(k1, (B, C), jnp.float32)
    target = jax.random.randint(k2, (B,), 0, C, jnp.int32)
    weight = jax.random.uniform(k3, (B,), jnp.float32, 0.5, 1.5)
    mu = 0.1 * jax.random.normal(k4, (B, D), jnp.float32)
    logvar = 0.1 * jax.random.normal(k5, (B, D), jnp.float32)

    args_default = SimpleNamespace(loss_mode='ce', loss_power=2.0,
                                   kl_lambda=0.01, hard_ratio=0.5)
    args_focal = SimpleNamespace(loss_mode='focal_loss', loss_power=2.0,
                                 kl_lambda=0.01, hard_ratio=0.5)

    # 1) Default (weighted CE) mode with KL term.
    loss1 = cls_loss(args_default, predy, target, weight=weight, mu=mu, logvar=logvar)
    jax.block_until_ready(loss1)
    ref1 = _reference(args_default, predy, target, weight=weight, mu=mu, logvar=logvar)
    assert jnp.allclose(loss1, ref1, rtol=1e-5, atol=1e-5), (loss1, ref1)

    # 2) Focal-loss mode, no weight / no KL.
    loss2 = cls_loss(args_focal, predy, target)
    jax.block_until_ready(loss2)
    ref2 = _reference(args_focal, predy, target)
    assert jnp.allclose(loss2, ref2, rtol=1e-5, atol=1e-5), (loss2, ref2)

    # 3) Non-multiple-of-8 batch (single exact block path, tb == B).
    B2 = 5
    loss3 = cls_loss(args_default, predy[:B2], target[:B2], weight=weight[:B2],
                     mu=mu[:B2], logvar=logvar[:B2])
    jax.block_until_ready(loss3)
    ref3 = _reference(args_default, predy[:B2], target[:B2], weight=weight[:B2],
                      mu=mu[:B2], logvar=logvar[:B2])
    assert jnp.allclose(loss3, ref3, rtol=1e-5, atol=1e-5), (loss3, ref3)

    # 4) Forced small tile: multi-step grid accumulation + ragged last block mask.
    B3 = 20
    k6, k7, k8, k9, k10 = jax.random.split(jax.random.PRNGKey(1), 5)
    predy3 = jax.random.normal(k6, (B3, C), jnp.float32)
    target3 = jax.random.randint(k7, (B3,), 0, C, jnp.int32)
    weight3 = jax.random.uniform(k8, (B3,), jnp.float32, 0.5, 1.5)
    mu3 = 0.1 * jax.random.normal(k9, (B3, D), jnp.float32)
    logvar3 = 0.1 * jax.random.normal(k10, (B3, D), jnp.float32)
    loss4 = cls_loss(args_default, predy3, target3, weight=weight3,
                     mu=mu3, logvar=logvar3, block_b=8)
    jax.block_until_ready(loss4)
    ref4 = _reference(args_default, predy3, target3, weight=weight3,
                      mu=mu3, logvar=logvar3)
    assert jnp.allclose(loss4, ref4, rtol=1e-5, atol=1e-5), (loss4, ref4)

    print("KERNEL_OK")
</pallas_src>

<mosaic_0001>
module attributes {stable_mosaic.version = 11 : i64} {
  func.func @_cls_loss_kernel(%arg0: i32, %arg1: memref<8x32xf32, #tpu.memory_space<vmem>>, %arg2: memref<8x1xi32, #tpu.memory_space<vmem>>, %arg3: memref<8x1xf32, #tpu.memory_space<vmem>>, %arg4: memref<8x16xf32, #tpu.memory_space<vmem>>, %arg5: memref<8x16xf32, #tpu.memory_space<vmem>>, %arg6: memref<1x1xf32, #tpu.memory_space<vmem>>) attributes {dimension_semantics = [#tpu.dimension_semantics<arbitrary>], iteration_bounds = array<i64: 1>, scalar_prefetch = 0 : i64, scratch_operands = 0 : i64, tpu.core_type = #tpu.core_type<tc>, window_params = [{transform_indices = @transform_0, window_bounds = array<i64: 8, 32>}, {transform_indices = @transform_1, window_bounds = array<i64: 8, 1>}, {transform_indices = @transform_2, window_bounds = array<i64: 8, 1>}, {transform_indices = @transform_3, window_bounds = array<i64: 8, 16>}, {transform_indices = @transform_4, window_bounds = array<i64: 8, 16>}, {pipeline_mode = #tpu.pipeline_mode<synchronous>, transform_indices = @transform_5, window_bounds = array<i64: 1, 1>}]} {
    %c0_i32 = arith.constant 0 : i32
    %0 = arith.cmpi eq, %arg0, %c0_i32 : i32
    %1 = arith.extui %0 : i1 to i32
    %c0_i32_0 = arith.constant 0 : i32
    %2 = arith.cmpi ne, %1, %c0_i32_0 : i32
    scf.if %2 {
      %cst_26 = arith.constant 0.000000e+00 : f32
      %55 = vector.broadcast %cst_26 : f32 to vector<1x1xf32>
      %c0_27 = arith.constant 0 : index
      %c0_28 = arith.constant 0 : index
      %56 = vector.load %arg6[%c0_27, %c0_28] : memref<1x1xf32, #tpu.memory_space<vmem>>, vector<1x1xf32>
      tpu.vector_store %arg6[%c0_27, %c0_28], %55 {strides = array<i32>} : memref<1x1xf32, #tpu.memory_space<vmem>>, vector<1x1xf32>,
    } else {
    }
    %c0 = arith.constant 0 : index
    %c0_1 = arith.constant 0 : index
    %3 = vector.load %arg1[%c0, %c0_1] : memref<8x32xf32, #tpu.memory_space<vmem>>, vector<8x32xf32>
    %cst = arith.constant dense<0xFF800000> : vector<8xf32>
    %4 = vector.multi_reduction <maximumf>, %3, %cst [1] : vector<8x32xf32> to vector<8xf32>
    %5 = vector.shape_cast %4 : vector<8xf32> to vector<8x1xf32>
    %6 = vector.broadcast %5 : vector<8x1xf32> to vector<8x32xf32>
    %7 = arith.subf %3, %6 : vector<8x32xf32>
    %8 = math.exp %7 : vector<8x32xf32>
    %cst_2 = arith.constant dense<0.000000e+00> : vector<8xf32>
    %9 = vector.multi_reduction <add>, %8, %cst_2 [1] : vector<8x32xf32> to vector<8xf32>
    %10 = vector.shape_cast %9 : vector<8xf32> to vector<8x1xf32>
    %11 = math.log %10 : vector<8x1xf32>
    %12 = arith.addf %11, %5 : vector<8x1xf32>
    %13 = tpu.iota {dimensions = array<i32: 1>} : vector<8x32xi32>
    %c0_3 = arith.constant 0 : index
    %c0_4 = arith.constant 0 : index
    %14 = vector.load %arg2[%c0_3, %c0_4] : memref<8x1xi32, #tpu.memory_space<vmem>>, vector<8x1xi32>
    %15 = vector.broadcast %14 : vector<8x1xi32> to vector<8x32xi32>
    %16 = arith.cmpi eq, %13, %15 : vector<8x32xi32>
    %cst_5 = arith.constant 0.000000e+00 : f32
    %17 = vector.broadcast %cst_5 : f32 to vector<8x32xf32>
    %18 = arith.select %16, %3, %17 : vector<8x32xi1>, vector<8x32xf32>
    %cst_6 = arith.constant dense<0.000000e+00> : vector<8xf32>
    %19 = vector.multi_reduction <add>, %18, %cst_6 [1] : vector<8x32xf32> to vector<8xf32>
    %20 = vector.shape_cast %19 : vector<8xf32> to vector<8x1xf32>
    %21 = arith.subf %12, %20 : vector<8x1xf32>
    %c0_7 = arith.constant 0 : index
    %c0_8 = arith.constant 0 : index
    %22 = vector.load %arg3[%c0_7, %c0_8] : memref<8x1xf32, #tpu.memory_space<vmem>>, vector<8x1xf32>
    %23 = arith.mulf %21, %22 : vector<8x1xf32>
    %c0_9 = arith.constant 0 : index
    %c0_10 = arith.constant 0 : index
    %24 = vector.load %arg4[%c0_9, %c0_10] : memref<8x16xf32, #tpu.memory_space<vmem>>, vector<8x16xf32>
    %c0_11 = arith.constant 0 : index
    %c0_12 = arith.constant 0 : index
    %25 = vector.load %arg5[%c0_11, %c0_12] : memref<8x16xf32, #tpu.memory_space<vmem>>, vector<8x16xf32>
    %26 = arith.mulf %24, %24 : vector<8x16xf32>
    %27 = math.exp %25 : vector<8x16xf32>
    %28 = arith.addf %26, %27 : vector<8x16xf32>
    %29 = arith.subf %28, %25 : vector<8x16xf32>
    %cst_13 = arith.constant 1.000000e+00 : f32
    %30 = vector.broadcast %cst_13 : f32 to vector<8x16xf32>
    %31 = arith.subf %29, %30 : vector<8x16xf32>
    %cst_14 = arith.constant 5.000000e-01 : f32
    %32 = vector.broadcast %cst_14 : f32 to vector<8x16xf32>
    %33 = arith.mulf %31, %32 : vector<8x16xf32>
    %cst_15 = arith.constant dense<0.000000e+00> : vector<8xf32>
    %34 = vector.multi_reduction <add>, %33, %cst_15 [1] : vector<8x16xf32> to vector<8xf32>
    %35 = vector.shape_cast %34 : vector<8xf32> to vector<8x1xf32>
    %cst_16 = arith.constant 0.00999999977 : f32
    %36 = vector.broadcast %cst_16 : f32 to vector<8x1xf32>
    %37 = arith.mulf %36, %35 : vector<8x1xf32>
    %38 = arith.addf %23, %37 : vector<8x1xf32>
    %c8_i32 = arith.constant 8 : i32
    %39 = arith.muli %arg0, %c8_i32 : i32
    %40 = tpu.iota {dimensions = array<i32: 0>} : vector<8x1xi32>
    %41 = vector.broadcast %39 : i32 to vector<8x1xi32>
    %42 = arith.addi %41, %40 : vector<8x1xi32>
    %c8_i32_17 = arith.constant 8 : i32
    %43 = vector.broadcast %c8_i32_17 : i32 to vector<8x1xi32>
    %44 = arith.cmpi slt, %42, %43 : vector<8x1xi32>
    %cst_18 = arith.constant 0.000000e+00 : f32
    %45 = vector.broadcast %cst_18 : f32 to vector<8x1xf32>
    %46 = arith.select %44, %38, %45 : vector<8x1xi1>, vector<8x1xf32>
    %c0_19 = arith.constant 0 : index
    %c0_20 = arith.constant 0 : index
    %47 = vector.load %arg6[%c0_19, %c0_20] : memref<1x1xf32, #tpu.memory_space<vmem>>, vector<1x1xf32>
    %cst_21 = arith.constant dense<0.000000e+00> : vector<1xf32>
    %48 = vector.multi_reduction <add>, %46, %cst_21 [0] : vector<8x1xf32> to vector<1xf32>
    %49 = vector.shape_cast %48 : vector<1xf32> to vector<1x1xf32>
    %50 = arith.addf %47, %49 : vector<1x1xf32>
    %c0_22 = arith.constant 0 : index
    %c0_23 = arith.constant 0 : index
    %51 = vector.load %arg6[%c0_22, %c0_23] : memref<1x1xf32, #tpu.memory_space<vmem>>, vector<1x1xf32>
    tpu.vector_store %arg6[%c0_22, %c0_23], %50 {strides = array<i32>} : memref<1x1xf32, #tpu.memory_space<vmem>>, vector<1x1xf32>,
    %c0_i32_24 = arith.constant 0 : i32
    %52 = arith.cmpi eq, %arg0, %c0_i32_24 : i32
    %53 = arith.extui %52 : i1 to i32
    %c0_i32_25 = arith.constant 0 : i32
    %54 = arith.cmpi ne, %53, %c0_i32_25 : i32
    scf.if %54 {
      %c0_26 = arith.constant 0 : index
      %c0_27 = arith.constant 0 : index
      %55 = vector.load %arg6[%c0_26, %c0_27] : memref<1x1xf32, #tpu.memory_space<vmem>>, vector<1x1xf32>
      %cst_28 = arith.constant 1.250000e-01 : f32
      %56 = vector.broadcast %cst_28 : f32 to vector<1x1xf32>
      %57 = arith.mulf %55, %56 : vector<1x1xf32>
      %c0_29 = arith.constant 0 : index
      %c0_30 = arith.constant 0 : index
      %58 = vector.load %arg6[%c0_29, %c0_30] : memref<1x1xf32, #tpu.memory_space<vmem>>, vector<1x1xf32>
      tpu.vector_store %arg6[%c0_29, %c0_30], %57 {strides = array<i32>} : memref<1x1xf32, #tpu.memory_space<vmem>>, vector<1x1xf32>,
    } else {
    }
    return
  }
  func.func @transform_0(%arg0: i32) -> (i32, i32) {
    %c0_i32 = arith.constant 0 : i32
    %c0_i32_0 = arith.constant 0 : i32
    return %arg0, %c0_i32 : i32, i32
  }
  func.func @transform_1(%arg0: i32) -> (i32, i32) {
    %c0_i32 = arith.constant 0 : i32
    %c0_i32_0 = arith.constant 0 : i32
    return %arg0, %c0_i32 : i32, i32
  }
  func.func @transform_2(%arg0: i32) -> (i32, i32) {
    %c0_i32 = arith.constant 0 : i32
    %c0_i32_0 = arith.constant 0 : i32
    return %arg0, %c0_i32 : i32, i32
  }
  func.func @transform_3(%arg0: i32) -> (i32, i32) {
    %c0_i32 = arith.constant 0 : i32
    %c0_i32_0 = arith.constant 0 : i32
    return %arg0, %c0_i32 : i32, i32
  }
  func.func @transform_4(%arg0: i32) -> (i32, i32) {
    %c0_i32 = arith.constant 0 : i32
    %c0_i32_0 = arith.constant 0 : i32
    return %arg0, %c0_i32 : i32, i32
  }
  func.func @transform_5(%arg0: i32) -> (i32, i32) {
    %c0_i32 = arith.constant 0 : i32
    %c0_i32_0 = arith.constant 0 : i32
    %c0_i32_1 = arith.constant 0 : i32
    return %c0_i32, %c0_i32_0 : i32, i32
  }
}

</mosaic_0001>

<llo_original>
// kernel: tpu_custom_call.1
$region0: #{tpu_custom_call.1}
  #allocation0 [shape = 'u32[]', space=smem, size = 0x4, offset = 0x4, fixed_abs, tag = 'smem constant byte address 0x4 - core index']
  #allocation1 [shape = 'u32[144,128]{1,0:T(1,128)}', space=vmem, size = 0x12000, scoped, tag = 'internal scratch']
  %s0 = inlined_call_operand.vmem [shape: f32[8,32], index: 0, kind: input, shape index: {}]
  %s1 = inlined_call_operand.vmem [shape: s32[8,1], index: 1, kind: input, shape index: {}]
  %s2 = inlined_call_operand.vmem [shape: f32[8,1], index: 2, kind: input, shape index: {}]
  %s3 = inlined_call_operand.vmem [shape: f32[8,16], index: 3, kind: input, shape index: {}]
  %s4 = inlined_call_operand.vmem [shape: f32[8,16], index: 4, kind: input, shape index: {}]
  %s5 = inlined_call_operand.hbm [shape: f32[1,1], index: 5, kind: output, shape index: {}]
  %s6 = sld [smem:[#allocation0]]
  $region38: #{tpu_custom_call.1} parent=0
    _
  %s8 = ssub.s32 1, %s6
  %s9 = scalar_select 0, %s8, %s6
  $region1: #{tpu_custom_call.1} parent=0
    #allocation2 [shape = 'u8[512]{0}', space=vmem, size = 0x400, scoped, tag = 'output window, operand 0, single buffered']
    #allocation3 [shape = 's32[1]{0}', space=sflag, size = 0x4, scoped, tag = 'scoped memory for tpu_custom_call.1']
    %10 = vsyncpa [#allocation3], 0
    // Predicated region
    $region2: #{tpu_custom_call.1} parent=1 // pred_check
      _
    $region3: #{tpu_custom_call.1} parent=1 // pred_check_branch
      %12 = sbr.rel (0) target = $region5
    $region4: #{tpu_custom_call.1} parent=1 // pred_region
      _
    $region5: #{tpu_custom_call.1} parent=1 // pred_fallthru
      _
    // Predicated region
    $region6: #{tpu_custom_call.1} parent=1 // pred_check
      _
    $region7: #{tpu_custom_call.1} parent=1 // pred_check_branch
      %14 = sbr.rel (0) target = $region9
    $region8: #{tpu_custom_call.1} parent=1 // pred_region
      _
    $region9: #{tpu_custom_call.1} parent=1 // pred_fallthru
      _
    // Predicated region
    $region10: #{tpu_custom_call.1} parent=1 // pred_check
      _
    $region11: #{tpu_custom_call.1} parent=1 // pred_check_branch
      %16 = sbr.rel (0) target = $region13
    $region12: #{tpu_custom_call.1} parent=1 // pred_region
      _
    $region13: #{tpu_custom_call.1} parent=1 // pred_fallthru
      _
    // Predicated region
    $region14: #{tpu_custom_call.1} parent=1 // pred_check
      _
    $region15: #{tpu_custom_call.1} parent=1 // pred_check_branch
      %18 = sbr.rel (0) target = $region17
    $region16: #{tpu_custom_call.1} parent=1 // pred_region
      _
    $region17: #{tpu_custom_call.1} parent=1 // pred_fallthru
      _
    // Predicated region
    $region18: #{tpu_custom_call.1} parent=1 // pred_check
      _
    $region19: #{tpu_custom_call.1} parent=1 // pred_check_branch
      %20 = sbr.rel (0) target = $region21
    $region20: #{tpu_custom_call.1} parent=1 // pred_region
      _
    $region21: #{tpu_custom_call.1} parent=1 // pred_fallthru
      _
    %p21 = scmp.eq.s32.totalorder 0, 0
    // Predicated region
    $region22: #{tpu_custom_call.1} parent=1 // pred_check
      %p22 = pneg %p21
    $region23: #{tpu_custom_call.1} parent=1 // pred_check_branch
      %24 = sbr.rel (%p22) target = $region25
    $region24: #{tpu_custom_call.1} parent=1 // pred_region
      %vm25 = vcmask 0
      %26 = vst.msk [vmem:[#allocation2] sm:$0x1] %vm25, 0.0
    $region25: #{tpu_custom_call.1} parent=1 // pred_fallthru
      _
    %v27 = vld [vmem:[%s0] sm:$0xff]
    %vm28 = vcmask 261120
    %v29 = vsel %vm28, %v27, -inf
    %30 = vmax.xlane.f32.xlu0 %v29
    %v31 = vpop.xlane.xlu0 %30
    %v32 = vsub.f32 %v27, %v31
    %v33 = vmul.f32 %v32, 1.442695
    %v34 = vpow.pop %v33
    %v35 = vsel %vm28, %v34, 0.0
    %36 = vadd.xlane.f32.xlu0 %v35
    %v37 = vpop.xlane.xlu0 %36
    %v38 = vlog2.pop %v37
    %v39 = vmul.f32 %v38, 0.6931472
    %v40 = vadd.f32 %v39, %v31
    %v41 = vlaneseq
    %v42 = vand.u32 %v41, 127
    %v43 = vld [vmem:[%s1] sm:$0xff]
    %44 = vset.pattern.permute.xlu0 0
    %45 = vperm.xlu0 %44, %v43
    %v46 = vpop.permute.xlu0 %45
    %vm47 = vcmp.eq.s32.totalorder %v42, %v46
    %v48 = vsel %vm47, %v27, 0.0
    %v49 = vsel %vm28, %v48, 0.0
    %50 = vadd.xlane.f32.xlu0 %v49
    %v51 = vpop.xlane.xlu0 %50
    %v52 = vsub.f32 %v40, %v51
    %v53 = vld [vmem:[%s2] sm:$0xff]
    %v54 = vmul.f32 %v52, %v53
    %v55 = vld [vmem:[%s3] sm:$0xff]
    %v56 = vld [vmem:[%s4] sm:$0xff]
    %v57 = vmul.f32 %v55, %v55
    %v58 = vmul.f32 %v56, 1.442695
    %v59 = vpow.pop %v58
    %v60 = vadd.f32 %v57, %v59
    %v61 = vsub.f32 %v60, %v56
    %v62 = vsub.f32 %v61, 1.0
    %v63 = vmul.f32 %v62, 0.5
    %vm64 = vcmask 130048
    %v65 = vsel %vm64, %v63, 0.0
    %66 = vadd.xlane.f32.xlu0 %v65
    %v67 = vpop.xlane.xlu0 %66
    %v68 = vmul.f32 %v67, 0.01
    %v69 = vadd.f32 %v54, %v68
    %s70 = smul.u32 0, 8
    %v71 = vlaneseq
    %v72 = vshrl.u32 %v71, 7
    %v73 = vstv %s70
    %v74 = vadd.s32 %v73, %v72
    %vm75 = vcmp.lt.s32.totalorder %v74, 8
    %v76 = vsel %vm75, %v69, 0.0
    %v77 = vld [vmem:[#allocation2] sm:$0x1]
    %vm78 = vcmask 7168
    %v79 = vsel %vm78, %v76, 0.0
    %v80 = vrot.slane %v79, 4
    %v81 = vadd.f32 %v79, %v80
    %v82 = vrot.slane %v81, 2
    %v83 = vadd.f32 %v81, %v82
    %v84 = vrot.slane %v83, 1
    %v85 = vadd.f32 %v83, %v84
    %v86 = vadd.f32 %v77, %v85
    %vm87 = vcmask 0
    %88 = vst.msk [vmem:[#allocation2] sm:$0x1] %vm87, %v86
    // Predicated region
    $region26: #{tpu_custom_call.1} parent=1 // pred_check
      %p89 = pneg %p21
    $region27: #{tpu_custom_call.1} parent=1 // pred_check_branch
      %91 = sbr.rel (%p89) target = $region29
    $region28: #{tpu_custom_call.1} parent=1 // pred_region
      %v92 = vld [vmem:[#allocation2] sm:$0x1]
      %v93 = vmul.f32 %v92, 0.125
      %94 = vst.msk [vmem:[#allocation2] sm:$0x1] %vm87, %v93
    $region29: #{tpu_custom_call.1} parent=1 // pred_fallthru
      _
    // Predicated region
    $region30: #{tpu_custom_call.1} parent=1 // pred_check
      _
    $region31: #{tpu_custom_call.1} parent=1 // pred_check_branch
      %96 = sbr.rel (0) target = $region33
    $region32: #{tpu_custom_call.1} parent=1 // pred_region
      %s98 = ssub.s32 16, 16
      %99 = vsyncadd [#allocation3], %s98
      %s101 = sshll.u32 [#allocation2], 4
      %s102 = int_to_ptr.vmem [resolvable:$true] %s101
      %104 = dma.vmem_to_hbm [thread:$0]  %s102, 16, %s5, [#allocation3]
    $region33: #{tpu_custom_call.1} parent=1 // pred_fallthru
      _
    // Predicated region
    $region34: #{tpu_custom_call.1} parent=1 // pred_check
      _
    $region35: #{tpu_custom_call.1} parent=1 // pred_check_branch
      %106 = sbr.rel (0) target = $region37
    $region36: #{tpu_custom_call.1} parent=1 // pred_region
      %107 = dma.done [#allocation3], 16
    $region37: #{tpu_custom_call.1} parent=1 // pred_fallthru
      _
    %108 = vsyncpa [#allocation3], 1

</llo_original>
